<compile_context>
chip_gen: v5e
topology: v5e:2x2
jax: 0.10.0
libtpu: 0.0.40
codegen_flags: <defaults>
</compile_context>

<pallas_src>
import jax
import jax.numpy as jnp
from jax.experimental import pallas as pl
from jax.experimental.pallas import tpu as pltpu


# ----------------------------------------------------------------------------
# Primary path: plain identity (the defined contract of the opaque forward).
# ----------------------------------------------------------------------------
def llm_script_model_forward(tokens: jax.Array) -> jax.Array:
    """Defined tensor contract of LLMScriptModel.forward: tokens in -> tokens out.

    The wrapped traced model is opaque, so no decode step can be computed.
    Per review feedback this path is a plain JAX identity (zero cost under
    jit, no custom-call launch overhead, no input-buffer donation).
    """
    return tokens


# ----------------------------------------------------------------------------
# Pallas path: materialized copy (when a fresh output buffer is required).
# Lane-dense where possible, tiled, pipelined, megacore-parallel, no wrapper
# pad/slice (no hidden extra HBM passes).
# ----------------------------------------------------------------------------
_LANES = 512             # lane-dense slab width: multiple of 128 -> unmasked vst
_MAX_BLOCK_ROWS = 1024   # 1024 x 512 x 4B = 2 MiB/block; 4x resident = 8 MiB VMEM
_FALLBACK_MAX_COLS = 2048  # fallback column block (multiple of 128)


def _copy_kernel(x_ref, o_ref):
    o_ref[...] = x_ref[...]


def _pick_block_rows(rows: int) -> int:
    """Row-block size: 8-aligned, VMEM-budgeted, >=2 grid steps when possible."""
    block_rows = min(_MAX_BLOCK_ROWS, rows)
    block_rows = max(8, (block_rows // 8) * 8)
    # Guarantee >= 2 grid steps when there is enough work so the "parallel"
    # axis can shard across v7x's two TensorCores (neutral on v5e/v6e).
    if rows > 8 and pl.cdiv(rows, block_rows) < 2:
        block_rows = max(8, ((rows // 2) // 8) * 8)
    return block_rows


def materialized_copy_forward(tokens: jax.Array) -> jax.Array:
    """Identity pass-through that materializes a fresh output buffer via Pallas.

    No wrapper-side padding or slicing: either a free contiguous reshape to a
    lane-dense (rows, 512) slab, or direct tiling of (b, s) with a 128-aligned
    column block (partial last block masked by Pallas).  Total HBM traffic is
    exactly 2 * b * s * itemsize.
    """
    b, s = tokens.shape
    n = b * s
    itemsize = jnp.dtype(tokens.dtype).itemsize
    cost = pl.CostEstimate(flops=0, transcendentals=0, bytes_accessed=2 * n * itemsize)

    if n % (8 * _LANES) == 0:
        # Lane-dense path: contiguous row-major reshape is a free view (no
        # extra HBM pass).  rows is a multiple of 8 by construction.
        rows = n // _LANES
        block_rows = _pick_block_rows(rows)
        x2d = tokens.reshape(rows, _LANES)
        out2d = pl.pallas_call(
            _copy_kernel,
            out_shape=jax.ShapeDtypeStruct((rows, _LANES), tokens.dtype),
            grid=(pl.cdiv(rows, block_rows),),
            in_specs=[pl.BlockSpec((block_rows, _LANES), lambda i: (i, 0))],
            out_specs=pl.BlockSpec((block_rows, _LANES), lambda i: (i, 0)),
            compiler_params=pltpu.CompilerParams(
                dimension_semantics=("parallel",),
            ),
            cost_estimate=cost,
        )(x2d)
        return out2d.reshape(b, s)

    # Fallback path: tile the original (b, s) directly along the sequence axis.
    # block = (b, block_cols); b equals the full array dim (allowed), block_cols
    # is either the full extent or a multiple of 128; the partial last block
    # (if any) is masked by Pallas -- no pad, no slice.
    block_cols = s if s <= _FALLBACK_MAX_COLS else _FALLBACK_MAX_COLS
    return pl.pallas_call(
        _copy_kernel,
        out_shape=jax.ShapeDtypeStruct((b, s), tokens.dtype),
        grid=(pl.cdiv(s, block_cols),),
        in_specs=[pl.BlockSpec((b, block_cols), lambda i: (0, i))],
        out_specs=pl.BlockSpec((b, block_cols), lambda i: (0, i)),
        compiler_params=pltpu.CompilerParams(
            dimension_semantics=("parallel",),
        ),
        cost_estimate=cost,
    )(tokens)


if __name__ == "__main__":
    key = jax.random.PRNGKey(0)

    # Small shape consistent with the module's (batch, seq) token input.
    batch, seq = 2, 8
    tokens = jax.random.randint(
        key, (batch, seq), minval=0, maxval=32, dtype=jnp.int32
    )

    out_id = jax.block_until_ready(llm_script_model_forward(tokens))
    out_copy = jax.block_until_ready(materialized_copy_forward(tokens))
    assert out_copy.shape == tokens.shape and out_copy.dtype == tokens.dtype
    assert bool(jnp.all(out_id == tokens))
    assert bool(jnp.all(out_copy == tokens))

    # Larger deterministic case exercising the lane-dense multi-step grid
    # (rows = 2048 -> 2 pipelined blocks of 1024 x 512).
    big = (jnp.arange(8 * 131072, dtype=jnp.int32) % 32000).reshape(8, 131072)
    big_copy = jax.block_until_ready(materialized_copy_forward(big))
    assert bool(jnp.all(big_copy == big))

    # Non-divisible case exercising the direct (b, s) fallback with a masked
    # partial last block (3 x 5000 -> blocks of (3, 2048), last block 904 cols).
    odd = (jnp.arange(3 * 5000, dtype=jnp.int32) % 32000).reshape(3, 5000)
    odd_copy = jax.block_until_ready(materialized_copy_forward(odd))
    assert bool(jnp.all(odd_copy == odd))

    print("KERNEL_OK")
</pallas_src>

<mosaic_0001>
module attributes {stable_mosaic.version = 11 : i64} {
  func.func @_copy_kernel(%arg0: i32, %arg1: memref<2x8xi32, #tpu.memory_space<vmem>>, %arg2: memref<2x8xi32, #tpu.memory_space<vmem>>) attributes {dimension_semantics = [#tpu.dimension_semantics<parallel>], iteration_bounds = array<i64: 1>, scalar_prefetch = 0 : i64, scratch_operands = 0 : i64, tpu.core_type = #tpu.core_type<tc>, window_params = [{transform_indices = @transform_0, window_bounds = array<i64: 2, 8>}, {transform_indices = @transform_1, window_bounds = array<i64: 2, 8>}]} {
    %c0 = arith.constant 0 : index
    %c0_0 = arith.constant 0 : index
    %0 = vector.load %arg1[%c0, %c0_0] : memref<2x8xi32, #tpu.memory_space<vmem>>, vector<2x8xi32>
    %c0_1 = arith.constant 0 : index
    %c0_2 = arith.constant 0 : index
    %1 = vector.load %arg2[%c0_1, %c0_2] : memref<2x8xi32, #tpu.memory_space<vmem>>, vector<2x8xi32>
    tpu.vector_store %arg2[%c0_1, %c0_2], %0 {strides = array<i32>} : memref<2x8xi32, #tpu.memory_space<vmem>>, vector<2x8xi32>,
    return
  }
  func.func @transform_0(%arg0: i32) -> (i32, i32) {
    %c0_i32 = arith.constant 0 : i32
    %c0_i32_0 = arith.constant 0 : i32
    return %c0_i32, %arg0 : i32, i32
  }
  func.func @transform_1(%arg0: i32) -> (i32, i32) {
    %c0_i32 = arith.constant 0 : i32
    %c0_i32_0 = arith.constant 0 : i32
    return %c0_i32, %arg0 : i32, i32
  }
}

</mosaic_0001>

<llo_original>
// kernel: tpu_custom_call.1
$region0: #{tpu_custom_call.1}
  #allocation0 [shape = 'u32[]', space=smem, size = 0x4, offset = 0x4, fixed_abs, tag = 'smem constant byte address 0x4 - core index']
  #allocation1 [shape = 'u32[72,128]{1,0:T(1,128)}', space=vmem, size = 0x9000, scoped, tag = 'internal scratch']
  %s0 = inlined_call_operand.hbm [shape: s32[2,8], index: 0, kind: input, shape index: {}]
  %s1 = inlined_call_operand.hbm [shape: s32[2,8], index: 1, kind: output, shape index: {}]
  %s2 = sld [smem:[#allocation0]]
  $region18: #{tpu_custom_call.1} parent=0
    _
  %s4 = ssub.s32 1, %s2
  %s5 = scalar_select 0, %s4, %s2
  $region1: #{tpu_custom_call.1} parent=0
    #allocation2 [shape = 'u8[1024]{0}', space=vmem, size = 0x400, scoped, tag = 'input window, operand 0, single buffered']
    #allocation3 [shape = 's32[1]{0}', space=sflag, size = 0x4, scoped, tag = 'scoped memory for tpu_custom_call.1']
    #allocation4 [shape = 's32[1]{0}', space=sflag, size = 0x4, scoped, tag = 'scoped memory for tpu_custom_call.1']
    #allocation5 [shape = 'u8[1024]{0}', space=vmem, size = 0x400, scoped, tag = 'output window, operand 0, single buffered']
    %6 = vsyncpa [#allocation3], 0
    %7 = vsyncpa [#allocation4], 0
    // Predicated region
    $region2: #{tpu_custom_call.1} parent=1 // pred_check
      _
    $region3: #{tpu_custom_call.1} parent=1 // pred_check_branch
      %9 = sbr.rel (0) target = $region5
    $region4: #{tpu_custom_call.1} parent=1 // pred_region
      %11 = vsyncadd [#allocation3], 0
      %s13 = sshll.u32 %s0, 4
      %s14 = int_to_ptr.hbm [resolvable:$true] %s13
      %s15 = sshll.u32 [#allocation2], 4
      %s16 = int_to_ptr.vmem [resolvable:$true] %s15
      %18 = dma.hbm_to_vmem [thread:$0]  %s14, 32, %s16, [#allocation3]
    $region5: #{tpu_custom_call.1} parent=1 // pred_fallthru
      _
    // Predicated region
    $region6: #{tpu_custom_call.1} parent=1 // pred_check
      _
    $region7: #{tpu_custom_call.1} parent=1 // pred_check_branch
      %20 = sbr.rel (0) target = $region9
    $region8: #{tpu_custom_call.1} parent=1 // pred_region
      %22 = dma.done [#allocation3], 32
    $region9: #{tpu_custom_call.1} parent=1 // pred_fallthru
      _
    %v23 = vld [vmem:[#allocation2] sm:$0x3]
    %vm24 = vcmask 58368
    %25 = vst.msk [vmem:[#allocation5] sm:$0x3] %vm24, %v23
    // Predicated region
    $region10: #{tpu_custom_call.1} parent=1 // pred_check
      _
    $region11: #{tpu_custom_call.1} parent=1 // pred_check_branch
      %27 = sbr.rel (0) target = $region13
    $region12: #{tpu_custom_call.1} parent=1 // pred_region
      %29 = vsyncadd [#allocation4], 0
      %s31 = sshll.u32 [#allocation5], 4
      %s32 = int_to_ptr.vmem [resolvable:$true] %s31
      %s33 = sshll.u32 %s1, 4
      %s34 = int_to_ptr.hbm [resolvable:$true] %s33
      %36 = dma.vmem_to_hbm [thread:$0]  %s32, 32, %s34, [#allocation4]
    $region13: #{tpu_custom_call.1} parent=1 // pred_fallthru
      _
    // Predicated region
    $region14: #{tpu_custom_call.1} parent=1 // pred_check
      _
    $region15: #{tpu_custom_call.1} parent=1 // pred_check_branch
      %38 = sbr.rel (0) target = $region17
    $region16: #{tpu_custom_call.1} parent=1 // pred_region
      %40 = dma.done [#allocation4], 32
    $region17: #{tpu_custom_call.1} parent=1 // pred_fallthru
      _
    %41 = vsyncpa [#allocation3], 1
    %42 = vsyncpa [#allocation4], 1

</llo_original>
